<compile_context>
chip_gen: v5e
topology: v5e:2x2
jax: 0.10.0
libtpu: 0.0.40
codegen_flags: <defaults>
</compile_context>

<pallas_src>
import jax
import jax.numpy as jnp
from jax import lax
from jax.experimental import pallas as pl
from jax.experimental.pallas import tpu as pltpu


# --------------------------------------------------------------------------
# Kernels
# --------------------------------------------------------------------------
def _fused_kernel(x_ref, w1t_ref, b1_ref, w2_ref, b2_ref, o_ref):
    # x_ref/o_ref: (1, C, HW) full-extent slab of one batch element.
    # w1t_ref: (C, Cr) first 1x1 conv weight, transposed, pre-scaled by 1/HW.
    # b1_ref: (1, Cr); w2_ref: (C, Cr); b2_ref: (C, 1).
    x = x_ref[0]                                                      # (C, HW)
    pooled = jnp.sum(x.astype(jnp.float32), axis=-1, keepdims=True)   # (C, 1)
    # Tiny channel MLP on the VPU/XLU (broadcast-mul + reduce); no MXU needed.
    h = jnp.sum(w1t_ref[...] * pooled, axis=0, keepdims=True) + b1_ref[...]
    h = jnp.maximum(h, 0.0)                                           # (1, Cr)
    y = jnp.sum(w2_ref[...] * h, axis=1, keepdims=True) + b2_ref[...]  # (C, 1)
    # Native-dtype broadcast add (bf16 stays bf16 on v6e/v7x).
    o_ref[0] = (x + y.astype(x.dtype)).astype(o_ref.dtype)


def _make_pool_kernel(hw_tile, hw_total, tiles_per_split, needs_mask):
    """Streaming partial-sum pool over HW tiles (lane-dense accumulator)."""
    nfull, rem = divmod(hw_tile, 128)

    def kernel(x_ref, o_ref, acc_ref):
        # x_ref: (1, C, hw_tile); o_ref: (1, 1, C, 1) f32; acc_ref: (C, 128) f32.
        t = pl.program_id(2)

        @pl.when(t == 0)
        def _init():
            acc_ref[...] = jnp.zeros_like(acc_ref)

        x = x_ref[0].astype(jnp.float32)                    # (C, hw_tile)
        if needs_mask:
            # Global HW-tile index (unclamped); zero out ragged tail / phantom
            # tiles that the clamped index_map re-reads.
            gt = pl.program_id(1) * tiles_per_split + t
            limit = jnp.clip(hw_total - gt * hw_tile, 0, hw_tile)
            col = lax.broadcasted_iota(jnp.int32, x.shape, 1)
            x = jnp.where(col < limit, x, 0.0)

        # Lane-dense accumulation: plain vreg adds in the hot loop; the single
        # cross-lane (XLU) reduce happens once per (n, split) in the finalize.
        part = None
        for k in range(nfull):
            chunk = x[:, k * 128:(k + 1) * 128]
            part = chunk if part is None else part + chunk
        if part is not None:
            acc_ref[...] += part
        if rem:
            acc_ref[:, :rem] += x[:, nfull * 128:]

        @pl.when(t == pl.num_programs(2) - 1)
        def _finalize():
            o_ref[0, 0] = jnp.sum(acc_ref[...], axis=-1, keepdims=True)

    return kernel


def _add_kernel(x_ref, y_ref, o_ref):
    # x_ref/o_ref: (row_tile, hw_tile) with rows = N*C collapsed (no sublane
    # padding for small C); y_ref: (row_tile, 1) f32 per-row offset.
    # Native-dtype add: bf16 stays bf16 on v6e/v7x; Mosaic widens on v5e.
    o_ref[...] = (x_ref[...] + y_ref[...].astype(o_ref.dtype)).astype(o_ref.dtype)


# --------------------------------------------------------------------------
# Tiling / budget helpers
# --------------------------------------------------------------------------
def _vmem_capacity_bytes():
    try:
        cap = int(pltpu.get_tpu_info().vmem_capacity_bytes)
        if cap > 0:
            return cap
    except Exception:
        pass
    return 64 * 1024 * 1024  # conservative: v7x per-TensorCore VMEM


def _round_down_multiple(v, m):
    return max((v // m) * m, m)


def _pick_pool_tile(hw, c, itemsize, budget, override):
    """Pass-1 lane tile: only the x input block is HW-sized (up to 3-buffered)."""
    if override is not None:
        return override
    per_buf = max(budget // 3, 128 * c * itemsize)
    max_lanes = min(4096, _round_down_multiple(per_buf // (c * itemsize), 128))
    if hw <= max_lanes:
        return hw              # one full-extent block (always layout-legal)
    return max_lanes           # multiple of 128; ragged tail masked in-kernel


def _pick_add_tiles(rows, hw, itemsize, budget, override):
    """Pass-2 tiles: 2 double-buffered HW-sized blocks (x in + out)."""
    per_buf = max(budget // 4, 8 * 128 * itemsize)
    if override is not None:
        hw_tile = override
    else:
        max_lanes = min(2048, _round_down_multiple(per_buf // (8 * itemsize), 128))
        hw_tile = hw if hw <= max_lanes else max_lanes
    max_rows = _round_down_multiple(per_buf // (hw_tile * itemsize), 8)
    row_tile = rows if rows <= max_rows else max_rows
    return row_tile, hw_tile


def _buffered_block_spec(shape, index_map, buffers=None):
    """BlockSpec with an optional deeper pipeline (pl.Buffered); falls back to
    default double-buffering if this JAX version lacks pipeline_mode."""
    if buffers is not None and buffers != 2:
        try:
            return pl.BlockSpec(shape, index_map, pipeline_mode=pl.Buffered(buffers))
        except Exception:
            pass
    return pl.BlockSpec(shape, index_map)


# --------------------------------------------------------------------------
# Forward pass
# --------------------------------------------------------------------------
def ca_forward(x_nchw, w1, b1, w2, b2, *, in_place=False, two_pass=None,
               hw_tile=None):
    """CA forward.

    x_nchw: (N, C, H, W); w1: (Cr, C, 1, 1); b1: (Cr,); w2: (C, Cr, 1, 1); b2: (C,).
    in_place: alias x with the output (enable together with buffer donation at
              the jit boundary; otherwise XLA inserts a defensive copy).
    two_pass: None = auto (fuse when the per-batch slab fits VMEM), True/False
              forces the streaming / fused path (testing, huge slabs).
    hw_tile:  optional lane-tile override for the streaming path (testing/tuning).
    """
    N, C, H, W = x_nchw.shape
    Cr = w1.shape[0]
    HW = H * W
    itemsize = x_nchw.dtype.itemsize

    # Free reshape: keep channel-major layout, HW on the lane axis.
    x_flat = x_nchw.reshape(N, C, HW)

    # Tiny MLP params laid out for VPU broadcast-reduce; 1/HW folded into w1.
    w1t = (w1.reshape(Cr, C).T * (1.0 / HW)).astype(jnp.float32)  # (C, Cr)
    b1r = b1.reshape(1, Cr).astype(jnp.float32)                   # (1, Cr)
    w2m = w2.reshape(C, Cr).astype(jnp.float32)                   # (C, Cr)
    b2c = b2.reshape(C, 1).astype(jnp.float32)                    # (C, 1)

    cap = _vmem_capacity_bytes()
    budget = int(cap * 0.7)        # block-buffer budget (headroom for scratch)
    vmem_limit = int(cap * 0.9)

    slab = C * HW * itemsize
    param_bytes = (2 * C * Cr + Cr + C) * 4
    fused_fits = 5 * slab + 4 * param_bytes <= budget   # 2x(in)+2x(out)+margin
    use_fused = fused_fits if two_pass is None else (not two_pass)

    io_alias = {0: 0} if in_place else {}

    if use_fused:
        # ---- Fused single pass: pool + MLP + broadcast add, 1 read + 1 write.
        # (For N == 1 on v7x this runs on a single TensorCore; cross-core
        #  pooling would need an explicit CMEM combine and is not worth it
        #  while the pass stays HBM-bound.)
        out_flat = pl.pallas_call(
            _fused_kernel,
            out_shape=jax.ShapeDtypeStruct((N, C, HW), x_nchw.dtype),
            grid_spec=pltpu.PrefetchScalarGridSpec(
                num_scalar_prefetch=0,
                grid=(N,),
                in_specs=[
                    pl.BlockSpec((1, C, HW), lambda n: (n, 0, 0)),
                    pl.BlockSpec((C, Cr), lambda n: (0, 0)),
                    pl.BlockSpec((1, Cr), lambda n: (0, 0)),
                    pl.BlockSpec((C, Cr), lambda n: (0, 0)),
                    pl.BlockSpec((C, 1), lambda n: (0, 0)),
                ],
                out_specs=pl.BlockSpec((1, C, HW), lambda n: (n, 0, 0)),
            ),
            compiler_params=pltpu.CompilerParams(
                dimension_semantics=("parallel",),
                vmem_limit_bytes=vmem_limit),
            input_output_aliases=io_alias,
        )(x_flat, w1t, b1r, w2m, b2c)
        return out_flat.reshape(N, C, H, W)

    # ---- Streaming fallback, pass 1: per-(batch, core-split) partial sums.
    tile1 = _pick_pool_tile(HW, C, itemsize, budget, hw_tile)
    num_tiles = pl.cdiv(HW, tile1)
    nsplit = 2 if num_tiles >= 2 else 1      # feed both v7x TCs even at N == 1
    tps = pl.cdiv(num_tiles, nsplit)
    phantom = nsplit * tps != num_tiles
    needs_mask = (HW % tile1 != 0) or phantom

    if phantom:
        x_index = lambda n, s, t: (n, 0, jnp.minimum(s * tps + t, num_tiles - 1))
    else:
        x_index = lambda n, s, t: (n, 0, s * tps + t)

    partials = pl.pallas_call(
        _make_pool_kernel(tile1, HW, tps, needs_mask),
        out_shape=jax.ShapeDtypeStruct((N, nsplit, C, 1), jnp.float32),
        grid_spec=pltpu.PrefetchScalarGridSpec(
            num_scalar_prefetch=0,
            grid=(N, nsplit, tps),
            in_specs=[_buffered_block_spec((1, C, tile1), x_index, buffers=3)],
            out_specs=pl.BlockSpec((1, 1, C, 1), lambda n, s, t: (n, s, 0, 0)),
            scratch_shapes=[pltpu.VMEM((C, 128), jnp.float32)],
        ),
        compiler_params=pltpu.CompilerParams(
            dimension_semantics=("parallel", "parallel", "arbitrary"),
            vmem_limit_bytes=vmem_limit),
    )(x_flat)

    # ---- Tiny combine + channel MLP on (N, C): negligible, plain XLA.
    pooled_sum = jnp.sum(partials[:, :, :, 0], axis=1)          # (N, C) f32
    h = jnp.maximum(pooled_sum @ w1t + b1r, 0.0)                # 1/HW is in w1t
    y_rows = (h @ w2m.T + b2c.T).astype(jnp.float32)            # (N, C)

    # ---- Pass 2: broadcast residual add; (N, C) collapsed onto sublanes.
    rows = N * C
    x2d = x_flat.reshape(rows, HW)
    y2d = y_rows.reshape(rows, 1)
    row_tile, tile2 = _pick_add_tiles(rows, HW, itemsize, budget, hw_tile)

    out2d = pl.pallas_call(
        _add_kernel,
        out_shape=jax.ShapeDtypeStruct((rows, HW), x_nchw.dtype),
        grid_spec=pltpu.PrefetchScalarGridSpec(
            num_scalar_prefetch=0,
            grid=(pl.cdiv(rows, row_tile), pl.cdiv(HW, tile2)),
            in_specs=[pl.BlockSpec((row_tile, tile2), lambda r, t: (r, t)),
                      pl.BlockSpec((row_tile, 1), lambda r, t: (r, 0))],
            out_specs=pl.BlockSpec((row_tile, tile2), lambda r, t: (r, t)),
        ),
        compiler_params=pltpu.CompilerParams(
            dimension_semantics=("parallel", "parallel"),
            vmem_limit_bytes=vmem_limit),
        input_output_aliases=io_alias,
    )(x2d, y2d)

    return out2d.reshape(N, C, H, W)


# --------------------------------------------------------------------------
# Pure-JAX reference (matches the PyTorch module)
# --------------------------------------------------------------------------
def ca_reference(x, w1, b1, w2, b2):
    pooled = jnp.mean(x.astype(jnp.float32), axis=(2, 3))         # (N, C)
    h = jnp.einsum("oc,nc->no", w1[:, :, 0, 0], pooled) + b1      # (N, Cr)
    h = jnp.maximum(h, 0.0)
    y = jnp.einsum("oc,nc->no", w2[:, :, 0, 0], h) + b2           # (N, C)
    return (x.astype(jnp.float32) + y[:, :, None, None]).astype(x.dtype)


if __name__ == "__main__":
    key = jax.random.PRNGKey(0)
    k1, k2, k3, k4, k5, k6 = jax.random.split(key, 6)

    # ---- Case 1: standard shapes -> fused single-pass path (f32 and bf16).
    N, C, H, W, reduction = 2, 4, 16, 16, 2
    Cr = C // reduction
    x = jax.random.normal(k1, (N, C, H, W), dtype=jnp.float32)
    w1 = jax.random.normal(k2, (Cr, C, 1, 1), dtype=jnp.float32) * 0.1
    b1 = jax.random.normal(k3, (Cr,), dtype=jnp.float32) * 0.1
    w2 = jax.random.normal(k4, (C, Cr, 1, 1), dtype=jnp.float32) * 0.1
    b2 = jax.random.normal(k5, (C,), dtype=jnp.float32) * 0.1

    ref = ca_reference(x, w1, b1, w2, b2)
    out = jax.block_until_ready(ca_forward(x, w1, b1, w2, b2))
    assert out.shape == (N, C, H, W) and out.dtype == x.dtype
    assert jnp.allclose(out, ref, rtol=1e-5, atol=1e-5), "fused f32 mismatch"

    x_bf = x.astype(jnp.bfloat16)
    ref_bf = ca_reference(x_bf, w1, b1, w2, b2).astype(jnp.float32)
    out_bf = jax.block_until_ready(ca_forward(x_bf, w1, b1, w2, b2))
    assert out_bf.dtype == jnp.bfloat16
    assert jnp.allclose(out_bf.astype(jnp.float32), ref_bf, rtol=5e-2, atol=5e-2), \
        "fused bf16 mismatch"

    # ---- Case 2: ragged HW (20*20 = 400) through the streaming fallback.
    N2, C2, red2 = 1, 5, 2
    Cr2 = C2 // red2
    x2 = jax.random.normal(k6, (N2, C2, 20, 20), dtype=jnp.float32)
    w1b = jax.random.normal(k2, (Cr2, C2, 1, 1), dtype=jnp.float32) * 0.1
    b1b = jax.random.normal(k3, (Cr2,), dtype=jnp.float32) * 0.1
    w2b = jax.random.normal(k4, (C2, Cr2, 1, 1), dtype=jnp.float32) * 0.1
    b2b = jax.random.normal(k5, (C2,), dtype=jnp.float32) * 0.1
    ref2 = ca_reference(x2, w1b, b1b, w2b, b2b)

    # (a) auto lane tile: single full-extent tile, remainder (<128 lanes) path.
    out2a = jax.block_until_ready(
        ca_forward(x2, w1b, b1b, w2b, b2b, two_pass=True))
    assert jnp.allclose(out2a, ref2, rtol=1e-5, atol=1e-5), "streaming(auto) mismatch"

    # (b) forced 128-lane tile: cdiv grid + ragged-tail masking + 2-way split.
    out2b = jax.block_until_ready(
        ca_forward(x2, w1b, b1b, w2b, b2b, two_pass=True, hw_tile=128))
    assert jnp.allclose(out2b, ref2, rtol=1e-5, atol=1e-5), "streaming(tiled) mismatch"

    print("KERNEL_OK")
</pallas_src>

<mosaic_0001>
module attributes {stable_mosaic.version = 11 : i64} {
  func.func @_fused_kernel(%arg0: i32, %arg1: memref<1x4x256xf32, #tpu.memory_space<vmem>>, %arg2: memref<4x2xf32, #tpu.memory_space<vmem>>, %arg3: memref<1x2xf32, #tpu.memory_space<vmem>>, %arg4: memref<4x2xf32, #tpu.memory_space<vmem>>, %arg5: memref<4x1xf32, #tpu.memory_space<vmem>>, %arg6: memref<1x4x256xf32, #tpu.memory_space<vmem>>) attributes {dimension_semantics = [#tpu.dimension_semantics<parallel>], iteration_bounds = array<i64: 2>, scalar_prefetch = 0 : i64, scratch_operands = 0 : i64, tpu.core_type = #tpu.core_type<tc>, window_params = [{transform_indices = @transform_0, window_bounds = array<i64: 1, 4, 256>}, {pipeline_mode = #tpu.pipeline_mode<synchronous>, transform_indices = @transform_1, window_bounds = array<i64: 4, 2>}, {pipeline_mode = #tpu.pipeline_mode<synchronous>, transform_indices = @transform_2, window_bounds = array<i64: 1, 2>}, {pipeline_mode = #tpu.pipeline_mode<synchronous>, transform_indices = @transform_3, window_bounds = array<i64: 4, 2>}, {pipeline_mode = #tpu.pipeline_mode<synchronous>, transform_indices = @transform_4, window_bounds = array<i64: 4, 1>}, {transform_indices = @transform_5, window_bounds = array<i64: 1, 4, 256>}]} {
    %c0 = arith.constant 0 : index
    %c0_0 = arith.constant 0 : index
    %c0_1 = arith.constant 0 : index
    %0 = vector.load %arg1[%c0, %c0_0, %c0_1] : memref<1x4x256xf32, #tpu.memory_space<vmem>>, vector<1x4x256xf32>
    %1 = vector.shape_cast %0 : vector<1x4x256xf32> to vector<4x256xf32>
    %cst = arith.constant dense<0.000000e+00> : vector<4xf32>
    %2 = vector.multi_reduction <add>, %1, %cst [1] : vector<4x256xf32> to vector<4xf32>
    %3 = vector.shape_cast %2 : vector<4xf32> to vector<4x1xf32>
    %c0_2 = arith.constant 0 : index
    %c0_3 = arith.constant 0 : index
    %4 = vector.load %arg2[%c0_2, %c0_3] : memref<4x2xf32, #tpu.memory_space<vmem>>, vector<4x2xf32>
    %5 = vector.broadcast %3 : vector<4x1xf32> to vector<4x2xf32>
    %6 = arith.mulf %4, %5 : vector<4x2xf32>
    %cst_4 = arith.constant dense<0.000000e+00> : vector<2xf32>
    %7 = vector.multi_reduction <add>, %6, %cst_4 [0] : vector<4x2xf32> to vector<2xf32>
    %8 = vector.shape_cast %7 : vector<2xf32> to vector<1x2xf32>
    %c0_5 = arith.constant 0 : index
    %c0_6 = arith.constant 0 : index
    %9 = vector.load %arg3[%c0_5, %c0_6] : memref<1x2xf32, #tpu.memory_space<vmem>>, vector<1x2xf32>
    %10 = arith.addf %8, %9 : vector<1x2xf32>
    %cst_7 = arith.constant 0.000000e+00 : f32
    %11 = vector.broadcast %cst_7 : f32 to vector<1x2xf32>
    %12 = arith.maximumf %10, %11 : vector<1x2xf32>
    %c0_8 = arith.constant 0 : index
    %c0_9 = arith.constant 0 : index
    %13 = vector.load %arg4[%c0_8, %c0_9] : memref<4x2xf32, #tpu.memory_space<vmem>>, vector<4x2xf32>
    %14 = vector.broadcast %12 : vector<1x2xf32> to vector<4x2xf32>
    %15 = arith.mulf %13, %14 : vector<4x2xf32>
    %cst_10 = arith.constant dense<0.000000e+00> : vector<4xf32>
    %16 = vector.multi_reduction <add>, %15, %cst_10 [1] : vector<4x2xf32> to vector<4xf32>
    %17 = vector.shape_cast %16 : vector<4xf32> to vector<4x1xf32>
    %c0_11 = arith.constant 0 : index
    %c0_12 = arith.constant 0 : index
    %18 = vector.load %arg5[%c0_11, %c0_12] : memref<4x1xf32, #tpu.memory_space<vmem>>, vector<4x1xf32>
    %19 = arith.addf %17, %18 : vector<4x1xf32>
    %20 = vector.broadcast %19 : vector<4x1xf32> to vector<4x256xf32>
    %21 = arith.addf %1, %20 : vector<4x256xf32>
    %c0_13 = arith.constant 0 : index
    %c0_14 = arith.constant 0 : index
    %c0_15 = arith.constant 0 : index
    %22 = vector.load %arg6[%c0_13, %c0_14, %c0_15] : memref<1x4x256xf32, #tpu.memory_space<vmem>>, vector<1x4x256xf32>
    %23 = vector.shape_cast %22 : vector<1x4x256xf32> to vector<4x256xf32>
    %24 = vector.shape_cast %21 : vector<4x256xf32> to vector<1x4x256xf32>
    tpu.vector_store %arg6[%c0_13, %c0_14, %c0_15], %24 {strides = array<i32>} : memref<1x4x256xf32, #tpu.memory_space<vmem>>, vector<1x4x256xf32>,
    return
  }
  func.func @transform_0(%arg0: i32) -> (i32, i32, i32) {
    %c0_i32 = arith.constant 0 : i32
    %c0_i32_0 = arith.constant 0 : i32
    %c0_i32_1 = arith.constant 0 : i32
    return %arg0, %c0_i32, %c0_i32_0 : i32, i32, i32
  }
  func.func @transform_1(%arg0: i32) -> (i32, i32) {
    %c0_i32 = arith.constant 0 : i32
    %c0_i32_0 = arith.constant 0 : i32
    %c0_i32_1 = arith.constant 0 : i32
    return %c0_i32, %c0_i32_0 : i32, i32
  }
  func.func @transform_2(%arg0: i32) -> (i32, i32) {
    %c0_i32 = arith.constant 0 : i32
    %c0_i32_0 = arith.constant 0 : i32
    %c0_i32_1 = arith.constant 0 : i32
    return %c0_i32, %c0_i32_0 : i32, i32
  }
  func.func @transform_3(%arg0: i32) -> (i32, i32) {
    %c0_i32 = arith.constant 0 : i32
    %c0_i32_0 = arith.constant 0 : i32
    %c0_i32_1 = arith.constant 0 : i32
    return %c0_i32, %c0_i32_0 : i32, i32
  }
  func.func @transform_4(%arg0: i32) -> (i32, i32) {
    %c0_i32 = arith.constant 0 : i32
    %c0_i32_0 = arith.constant 0 : i32
    %c0_i32_1 = arith.constant 0 : i32
    return %c0_i32, %c0_i32_0 : i32, i32
  }
  func.func @transform_5(%arg0: i32) -> (i32, i32, i32) {
    %c0_i32 = arith.constant 0 : i32
    %c0_i32_0 = arith.constant 0 : i32
    %c0_i32_1 = arith.constant 0 : i32
    return %arg0, %c0_i32, %c0_i32_0 : i32, i32, i32
  }
}

</mosaic_0001>

<llo_original>
// kernel: tpu_custom_call.1
$region0: #{tpu_custom_call.1}
  #allocation0 [shape = 'u32[]', space=smem, size = 0x4, offset = 0x4, fixed_abs, tag = 'smem constant byte address 0x4 - core index']
  #allocation1 [shape = 'u32[72,128]{1,0:T(1,128)}', space=vmem, size = 0x9000, scoped, tag = 'internal scratch']
  %s0 = inlined_call_operand.hbm [shape: f32[2,4,256], index: 0, kind: input, shape index: {}]
  %s1 = inlined_call_operand.vmem [shape: f32[4,2], index: 1, kind: input, shape index: {}]
  %s2 = inlined_call_operand.vmem [shape: f32[1,2], index: 2, kind: input, shape index: {}]
  %s3 = inlined_call_operand.vmem [shape: f32[4,2], index: 3, kind: input, shape index: {}]
  %s4 = inlined_call_operand.vmem [shape: f32[4,1], index: 4, kind: input, shape index: {}]
  %s5 = inlined_call_operand.hbm [shape: f32[2,4,256], index: 5, kind: output, shape index: {}]
  %s6 = sld [smem:[#allocation0]]
  $region57: #{tpu_custom_call.1} parent=0
    _
  %s8 = ssub.s32 1, %s6
  %s9 = scalar_select 0, %s8, %s6
  $region1: #{tpu_custom_call.1} parent=0
    #allocation2 [shape = 'u8[8192]{0}', space=vmem, size = 0x2000, scoped, tag = 'input window, operand 0']
    #allocation3 [shape = 's32[2]{0}', space=sflag, size = 0x8, scoped, tag = 'scoped memory for tpu_custom_call.1']
    #allocation4 [shape = 's32[2]{0}', space=sflag, size = 0x8, scoped, tag = 'scoped memory for tpu_custom_call.1']
    #allocation5 [shape = 'u8[8192]{0}', space=vmem, size = 0x2000, scoped, tag = 'output window, operand 0']
    %10 = vsyncpa [#allocation3], 0
    %s11 = scalar_lea.sflag [#allocation3], 1
    %12 = vsyncpa %s11, 0
    %13 = vsyncpa [#allocation4], 0
    %s14 = scalar_lea.sflag [#allocation4], 1
    %15 = vsyncpa %s14, 0
    loop: start=0, step=1, limit=4
    $region2: #{tpu_custom_call.1} parent=1 // loop_pre_header
      _
    $region3: #{tpu_custom_call.1} parent=1 // loop_header
      %s17 = sphi 0, %s21
      %p18 = scmp.ge.s32.totalorder %s17, 4
      %s27 = sphi 0, %s29
      %s30 = sphi 0, %s27
      %s31 = sphi 0, %s30
      %s47 = sphi 0, %s31
      %s51 = sphi 0, %s51
      %s53 = sphi 0, %s51
      %s54 = sphi 0, %s53
      %s68 = sphi 0, %s54
      %s72 = sphi 0, %s72
      %s74 = sphi 0, %s72
      %s75 = sphi 0, %s74
      %s89 = sphi 0, %s75
      %s93 = sphi 0, %s93
      %s95 = sphi 0, %s93
      %s96 = sphi 0, %s95
      %s110 = sphi 0, %s96
      %s114 = sphi 0, %s114
      %s116 = sphi 0, %s114
      %s117 = sphi 0, %s116
      %s131 = sphi 0, %s117
      %s137 = sphi 0, %s139
      %s140 = sphi 0, %s137
      %s141 = sphi 0, %s140
      %s157 = sphi 0, %s141
    $region4: #{tpu_custom_call.1} parent=1 // loop_header_branch
      %20 = sbr.rel (%p18) target = $region8
    $region5: #{tpu_custom_call.1} parent=1 // loop_body
      %s22 = ssub.s32 %s17, 1
      %s23 = ssub.s32 %s17, 2
      %s24 = sadd.s32 %s17, 1
      %s25 = ssub.s32 %s17, %s24
      %p26 = scmp.eq.s32.totalorder %s25, 0
      %s28 = sadd.s32 %s27, 1
      %s29 = scalar_select %p26, %s27, %s28
      %p32 = pneg %p26
      %p33 = scmp.eq.s32.totalorder %s17, 1
      %p34 = por %p32, %p33
      %p35 = scmp.ne.s32.totalorder %s27, %s30
      %p36 = scmp.eq.s32.totalorder %s17, 0
      %p37 = por %p35, %p36
      %p38 = scmp.ne.s32.totalorder %s27, %s30
      %p39 = scmp.eq.s32.totalorder %s22, 1
      %p40 = por %p38, %p39
      %p41 = scmp.ne.s32.totalorder %s30, %s31
      %p42 = scmp.eq.s32.totalorder %s22, 0
      %p43 = por %p41, %p42
      %p44 = scmp.ne.s32.totalorder %s30, %s31
      %p45 = scmp.eq.s32.totalorder %s23, 1
      %p46 = por %p44, %p45
      %p48 = scmp.ne.s32.totalorder %s31, %s47
      %p49 = scmp.eq.s32.totalorder %s23, 0
      %p50 = por %p48, %p49
      %s52 = sadd.s32 %s51, 1
      %p55 = scmp.eq.s32.totalorder %s17, 1
      %p56 = scmp.ne.s32.totalorder %s51, %s53
      %p57 = scmp.eq.s32.totalorder %s17, 0
      %p58 = por %p56, %p57
      %p59 = scmp.ne.s32.totalorder %s51, %s53
      %p60 = scmp.eq.s32.totalorder %s22, 1
      %p61 = por %p59, %p60
      %p62 = scmp.ne.s32.totalorder %s53, %s54
      %p63 = scmp.eq.s32.totalorder %s22, 0
      %p64 = por %p62, %p63
      %p65 = scmp.ne.s32.totalorder %s53, %s54
      %p66 = scmp.eq.s32.totalorder %s23, 1
      %p67 = por %p65, %p66
      %p69 = scmp.ne.s32.totalorder %s54, %s68
      %p70 = scmp.eq.s32.totalorder %s23, 0
      %p71 = por %p69, %p70
      %s73 = sadd.s32 %s72, 1
      %p76 = scmp.eq.s32.totalorder %s17, 1
      %p77 = scmp.ne.s32.totalorder %s72, %s74
      %p78 = scmp.eq.s32.totalorder %s17, 0
      %p79 = por %p77, %p78
      %p80 = scmp.ne.s32.totalorder %s72, %s74
      %p81 = scmp.eq.s32.totalorder %s22, 1
      %p82 = por %p80, %p81
      %p83 = scmp.ne.s32.totalorder %s74, %s75
      %p84 = scmp.eq.s32.totalorder %s22, 0
      %p85 = por %p83, %p84
      %p86 = scmp.ne.s32.totalorder %s74, %s75
      %p87 = scmp.eq.s32.totalorder %s23, 1
      %p88 = por %p86, %p87
      %p90 = scmp.ne.s32.totalorder %s75, %s89
      %p91 = scmp.eq.s32.totalorder %s23, 0
      %p92 = por %p90, %p91
      %s94 = sadd.s32 %s93, 1
      %p97 = scmp.eq.s32.totalorder %s17, 1
      %p98 = scmp.ne.s32.totalorder %s93, %s95
      %p99 = scmp.eq.s32.totalorder %s17, 0
      %p100 = por %p98, %p99
      %p101 = scmp.ne.s32.totalorder %s93, %s95
      %p102 = scmp.eq.s32.totalorder %s22, 1
      %p103 = por %p101, %p102
      %p104 = scmp.ne.s32.totalorder %s95, %s96
      %p105 = scmp.eq.s32.totalorder %s22, 0
      %p106 = por %p104, %p105
      %p107 = scmp.ne.s32.totalorder %s95, %s96
      %p108 = scmp.eq.s32.totalorder %s23, 1
      %p109 = por %p107, %p108
      %p111 = scmp.ne.s32.totalorder %s96, %s110
      %p112 = scmp.eq.s32.totalorder %s23, 0
      %p113 = por %p111, %p112
      %s115 = sadd.s32 %s114, 1
      %p118 = scmp.eq.s32.totalorder %s17, 1
      %p119 = scmp.ne.s32.totalorder %s114, %s116
      %p120 = scmp.eq.s32.totalorder %s17, 0
      %p121 = por %p119, %p120
      %p122 = scmp.ne.s32.totalorder %s114, %s116
      %p123 = scmp.eq.s32.totalorder %s22, 1
      %p124 = por %p122, %p123
      %p125 = scmp.ne.s32.totalorder %s116, %s117
      %p126 = scmp.eq.s32.totalorder %s22, 0
      %p127 = por %p125, %p126
      %p128 = scmp.ne.s32.totalorder %s116, %s117
      %p129 = scmp.eq.s32.totalorder %s23, 1
      %p130 = por %p128, %p129
      %p132 = scmp.ne.s32.totalorder %s117, %s131
      %p133 = scmp.eq.s32.totalorder %s23, 0
      %p134 = por %p132, %p133
      %s135 = ssub.s32 %s17, %s24
      %p136 = scmp.eq.s32.totalorder %s135, 0
      %s138 = sadd.s32 %s137, 1
      %s139 = scalar_select %p136, %s137, %s138
      %p142 = pneg %p136
      %p143 = scmp.eq.s32.totalorder %s17, 1
      %p144 = por %p142, %p143
      %p145 = scmp.ne.s32.totalorder %s137, %s140
      %p146 = scmp.eq.s32.totalorder %s17, 0
      %p147 = por %p145, %p146
      %p148 = scmp.ne.s32.totalorder %s137, %s140
      %p149 = scmp.eq.s32.totalorder %s22, 1
      %p150 = por %p148, %p149
      %p151 = scmp.ne.s32.totalorder %s140, %s141
      %p152 = scmp.eq.s32.totalorder %s22, 0
      %p153 = por %p151, %p152
      %p154 = scmp.ne.s32.totalorder %s140, %s141
      %p155 = scmp.eq.s32.totalorder %s23, 1
      %p156 = por %p154, %p155
      %p158 = scmp.ne.s32.totalorder %s141, %s157
      %p159 = scmp.eq.s32.totalorder %s23, 0
      %p160 = por %p158, %p159
      %p161 = scmp.le.s32.totalorder 1, %s17
      %p162 = scmp.lt.s32.totalorder %s17, 3
      %p163 = pnand %p161, %p162
      %p164 = pneg %p163
      // Predicated region
      $region9: #{tpu_custom_call.1} parent=5 // pred_check
        _
      $region10: #{tpu_custom_call.1} parent=5 // pred_check_branch
        %166 = sbr.rel (%p163) target = $region12
      $region11: #{tpu_custom_call.1} parent=5 // pred_region
        %s167 = ssub.s32 %s17, 1
        // Predicated region
        $region13: #{tpu_custom_call.1} parent=11 // pred_check
          %p168 = pneg %p64
        $region14: #{tpu_custom_call.1} parent=11 // pred_check_branch
          %170 = sbr.rel (%p168) target = $region16
        $region15: #{tpu_custom_call.1} parent=11 // pred_region
          _
        $region16: #{tpu_custom_call.1} parent=11 // pred_fallthru
          _
        // Predicated region
        $region17: #{tpu_custom_call.1} parent=11 // pred_check
          %p171 = pneg %p85
        $region18: #{tpu_custom_call.1} parent=11 // pred_check_branch
          %173 = sbr.rel (%p171) target = $region20
        $region19: #{tpu_custom_call.1} parent=11 // pred_region
          _
        $region20: #{tpu_custom_call.1} parent=11 // pred_fallthru
          _
        // Predicated region
        $region21: #{tpu_custom_call.1} parent=11 // pred_check
          %p174 = pneg %p106
        $region22: #{tpu_custom_call.1} parent=11 // pred_check_branch
          %176 = sbr.rel (%p174) target = $region24
        $region23: #{tpu_custom_call.1} parent=11 // pred_region
          _
        $region24: #{tpu_custom_call.1} parent=11 // pred_fallthru
          _
        // Predicated region
        $region25: #{tpu_custom_call.1} parent=11 // pred_check
          %p177 = pneg %p127
        $region26: #{tpu_custom_call.1} parent=11 // pred_check_branch
          %179 = sbr.rel (%p177) target = $region28
        $region27: #{tpu_custom_call.1} parent=11 // pred_region
          _
        $region28: #{tpu_custom_call.1} parent=11 // pred_fallthru
          _
      $region12: #{tpu_custom_call.1} parent=5 // pred_fallthru
        _
      %p180 = scmp.lt.s32.totalorder %s17, 2
      // Predicated region
      $region29: #{tpu_custom_call.1} parent=5 // pred_check
        %p181 = pneg %p180
      $region30: #{tpu_custom_call.1} parent=5 // pred_check_branch
        %183 = sbr.rel (%p181) target = $region32
      $region31: #{tpu_custom_call.1} parent=5 // pred_region
        // Predicated region
        $region33: #{tpu_custom_call.1} parent=31 // pred_check
          %p184 = pneg %p37
        $region34: #{tpu_custom_call.1} parent=31 // pred_check_branch
          %186 = sbr.rel (%p184) target = $region36
        $region35: #{tpu_custom_call.1} parent=31 // pred_region
          %s187 = sand.u32 %s27, 1
          %s188 = scalar_lea.sflag [#allocation3], %s187
          %s189 = sand.u32 %s27, 1
          %s190 = smul.addr %s189, 8
          %s191 = scalar_lea.vmem [#allocation2], %s190
          %193 = vsyncadd %s188, 0
          %s194 = smul.addr %s17, 2
          %s195 = smul.addr %s194, 4
          %s196 = scalar_lea.hbm %s0, %s195
          %s198 = sshll.u32 %s196, 4
          %s199 = int_to_ptr.hbm [resolvable:$true] %s198
          %s200 = sshll.u32 %s191, 4
          %s201 = int_to_ptr.vmem [resolvable:$true] %s200
          %203 = dma.hbm_to_vmem [thread:$0]  %s199, 128, %s201, %s188
        $region36: #{tpu_custom_call.1} parent=31 // pred_fallthru
          _
      $region32: #{tpu_custom_call.1} parent=5 // pred_fallthru
        _
      %p204 = scmp.le.s32.totalorder 1, %s17
      %p205 = scmp.lt.s32.totalorder %s17, 3
      %p206 = pnand %p204, %p205
      %p207 = pneg %p206
      // Predicated region
      $region37: #{tpu_custom_call.1} parent=5 // pred_check
        _
      $region38: #{tpu_custom_call.1} parent=5 // pred_check_branch
        %209 = sbr.rel (%p206) target = $region40
      $region39: #{tpu_custom_call.1} parent=5 // pred_region
        %s210 = ssub.s32 %s17, 1
        %s211 = sand.u32 %s30, 1
        %s212 = scalar_lea.sflag [#allocation3], %s211
        %s213 = sand.u32 %s30, 1
        %s214 = smul.addr %s213, 8
        %s215 = scalar_lea.vmem [#allocation2], %s214
        // Predicated region
        $region41: #{tpu_custom_call.1} parent=39 // pred_check
          %p216 = pneg %p43
        $region42: #{tpu_custom_call.1} parent=39 // pred_check_branch
          %218 = sbr.rel (%p216) target = $region44
        $region43: #{tpu_custom_call.1} parent=39 // pred_region
          %220 = dma.done %s212, 128
        $region44: #{tpu_custom_call.1} parent=39 // pred_fallthru
          _
        %s221 = sand.u32 %s30, 1
        %s222 = scalar_lea.sflag [#allocation3], %s221
        %s223 = sand.u32 %s30, 1
        %s224 = smul.addr %s223, 8
        %s225 = scalar_lea.vmem [#allocation2], %s224
        %p226 = pneg %p43
        %p227 = pneg %p40
        %p228 = pneg %p64
        %p229 = pneg %p61
        %p230 = pneg %p85
        %p231 = pneg %p82
        %p232 = pneg %p106
        %p233 = pneg %p103
        %p234 = pneg %p127
        %p235 = pneg %p124
        %p236 = pneg %p153
        %p237 = pneg %p150
        %s238 = sand.u32 %s140, 1
        %s239 = scalar_lea.sflag [#allocation4], %s238
        %s240 = sand.u32 %s140, 1
        %s241 = smul.addr %s240, 8
        %s242 = scalar_lea.vmem [#allocation5], %s241
        %v243 = vld [vmem:[%s215] sm:$0xff]
        %245 = vst [vmem:[#allocation1] ss:$2 sm:$0xff] %v243
        %v246 = vld.sshfl [vmem:[#allocation1] sm:$0xff pattern:$0x75316420]
        %v247 = vld.sshfl [vmem:[#allocation1 + $0x8] sm:$0xff pattern:$0x75316420]
        %vm250 = vcmask 1043456
        %v251 = vsel %vm250, %v246, 0.0
        %v252 = vsel %vm250, %v247, 0.0
        %v253 = vadd.f32 %v251, %v252
        %254 = vadd.xlane.f32.xlu0 %v253
        %v255 = vpop.xlane.xlu0 %254
        %v256 = vld [vmem:[%s1] sm:$0xf]
        %v257 = vmul.f32 %v256, %v255
        %vm258 = vcmask 11264
        %v259 = vsel %vm258, %v257, 0.0
        %v260 = vrot.slane %v259, 4
        %v261 = vadd.f32 %v259, %v260
        %v262 = vrot.slane %v261, 2
        %v263 = vadd.f32 %v261, %v262
        %v264 = vrot.slane %v263, 1
        %v265 = vadd.f32 %v263, %v264
        %v266 = vld [vmem:[%s2] sm:$0x1]
        %v267 = vadd.f32 %v265, %v266
        %v268 = vmax.f32 %v267, 0.0
        %v269 = vld [vmem:[%s3] sm:$0xf]
        %v270 = vperm.slane %v268, 0
        %v271 = vmul.f32 %v269, %v270
        %v272 = vsel %vm258, %v271, 0.0
        %273 = vadd.xlane.f32.xlu0 %v272
        %v274 = vpop.xlane.xlu0 %273
        %v275 = vld [vmem:[%s4] sm:$0xf]
        %v276 = vadd.f32 %v274, %v275
        %278 = vset.pattern.permute.xlu0 0
        %279 = vperm.xlu0 %278, %v276
        %v280 = vpop.permute.xlu0 %279
        %v282 = vunpack.c.l.s4 839922192
        %v283 = vunpack.c.0.s8 %v282
        %v284 = vperm.slane %v280, %v283
        %v286 = vadd.f32 %v243, %v284
        %287 = vst [vmem:[%s242] sm:$0xff] %v286
        %s288 = sand.u32 %s140, 1
        %s289 = scalar_lea.sflag [#allocation4], %s288
        %s290 = sand.u32 %s140, 1
        %s291 = smul.addr %s290, 8
        %s292 = scalar_lea.vmem [#allocation5], %s291
        // Predicated region
        $region45: #{tpu_custom_call.1} parent=39 // pred_check
          %p293 = pneg %p150
        $region46: #{tpu_custom_call.1} parent=39 // pred_check_branch
          %295 = sbr.rel (%p293) target = $region48
        $region47: #{tpu_custom_call.1} parent=39 // pred_region
          %297 = vsyncadd %s289, 0
          %s298 = smul.addr %s22, 2
          %s299 = smul.addr %s298, 4
          %s300 = scalar_lea.hbm %s5, %s299
          %s302 = sshll.u32 %s292, 4
          %s303 = int_to_ptr.vmem [resolvable:$true] %s302
          %s304 = sshll.u32 %s300, 4
          %s305 = int_to_ptr.hbm [resolvable:$true] %s304
          %307 = dma.vmem_to_hbm [thread:$0]  %s303, 128, %s305, %s289
        $region48: #{tpu_custom_call.1} parent=39 // pred_fallthru
          _
      $region40: #{tpu_custom_call.1} parent=5 // pred_fallthru
        _
      %p308 = scmp.le.s32.totalorder 2, %s17
      // Predicated region
      $region49: #{tpu_custom_call.1} parent=5 // pred_check
        %p309 = pneg %p308
      $region50: #{tpu_custom_call.1} parent=5 // pred_check_branch
        %311 = sbr.rel (%p309) target = $region52
      $region51: #{tpu_custom_call.1} parent=5 // pred_region
        %s312 = ssub.s32 %s17, 2
        // Predicated region
        $region53: #{tpu_custom_call.1} parent=51 // pred_check
          %p313 = pneg %p156
        $region54: #{tpu_custom_call.1} parent=51 // pred_check_branch
          %315 = sbr.rel (%p313) target = $region56
        $region55: #{tpu_custom_call.1} parent=51 // pred_region
          %s316 = sand.u32 %s141, 1
          %s317 = scalar_lea.sflag [#allocation4], %s316
          %s318 = sand.u32 %s141, 1
          %s319 = smul.addr %s318, 8
          %s320 = scalar_lea.vmem [#allocation5], %s319
          %322 = dma.done %s317, 128
        $region56: #{tpu_custom_call.1} parent=51 // pred_fallthru
          _
      $region52: #{tpu_custom_call.1} parent=5 // pred_fallthru
        _
    $region6: #{tpu_custom_call.1} parent=1 // loop_footer
      %s21 = sadd.s32 1, %s17
    $region7: #{tpu_custom_call.1} parent=1 // loop_footer_branch
      %16 = sbr.rel target = $region3
    $region8: #{tpu_custom_call.1} parent=1 // loop_exit
      _
    %323 = vsyncpa [#allocation3], 1
    %s324 = scalar_lea.sflag [#allocation3], 1
    %325 = vsyncpa %s324, 1
    %326 = vsyncpa [#allocation4], 1
    %s327 = scalar_lea.sflag [#allocation4], 1
    %328 = vsyncpa %s327, 1

</llo_original>
